<compile_context>
chip_gen: v6e
topology: v6e:2x2x1
jax: 0.10.0
libtpu: 0.0.40
codegen_flags: <defaults>
</compile_context>

<pallas_src>
import functools

import jax
import jax.numpy as jnp
from jax.experimental import pallas as pl
from jax.experimental.pallas import tpu as pltpu


# --------------------------------------------------------------------------
# Kernel
# --------------------------------------------------------------------------
def fusion_kernel(text_ref, img_ref, wt_ref, wi_ref, b_ref, out_ref,
                  tsum_ref, isum_ref, *, n_steps, n_text_steps, n_img_steps,
                  sub, lane):
    k = pl.program_id(1)

    @pl.when(k == 0)
    def _init():
        tsum_ref[...] = jnp.zeros_like(tsum_ref)
        isum_ref[...] = jnp.zeros_like(isum_ref)

    # Hot loop: pure VPU adds into wide partials (mean scales are folded into
    # the classifier weights, so the reduction is a plain add chain; the
    # cross-sublane / cross-lane reduces are deferred to the epilogue).
    def _acc_text():
        x = text_ref[...].astype(jnp.float32)            # [TB, TS, Ht]
        ts = x.shape[1]
        part = x[:, 0:sub, :]
        for j in range(1, ts // sub):                    # static, sublane-aligned
            part = part + x[:, j * sub:(j + 1) * sub, :]
        tsum_ref[...] += part                            # [TB, sub, Ht]

    def _acc_img():
        # adaptive_avg_pool2d(x, 1) == mean over H*W; image comes in as
        # [TB, C, THW] so the pooled axis is the lane dim.
        x = img_ref[...].astype(jnp.float32)             # [TB, C, THW]
        thw = x.shape[2]
        part = x[:, :, 0:lane]
        for j in range(1, thw // lane):                  # static, 128-lane slices
            part = part + x[:, :, j * lane:(j + 1) * lane]
        isum_ref[...] += part                            # [TB, C, lane]

    if n_text_steps == n_steps:
        _acc_text()
    else:
        pl.when(k < n_text_steps)(_acc_text)

    if n_img_steps == n_steps:
        _acc_img()
    else:
        pl.when(k < n_img_steps)(_acc_img)

    # TODO(synk): training-mode dropout (inference => identity).
    @pl.when(k == n_steps - 1)
    def _finalize():
        # One cross-sublane and one cross-lane reduce per batch tile.
        text_sum = jnp.sum(tsum_ref[...], axis=1)        # [TB, Ht]
        img_sum = jnp.sum(isum_ref[...], axis=-1)        # [TB, C]
        logits = (
            jnp.dot(text_sum, wt_ref[...], preferred_element_type=jnp.float32)
            + jnp.dot(img_sum, wi_ref[...], preferred_element_type=jnp.float32)
            + b_ref[...]
        )
        out_ref[...] = logits.astype(out_ref.dtype)


# --------------------------------------------------------------------------
# Tile-sizing helpers
# --------------------------------------------------------------------------
def _vmem_capacity_bytes():
    """Per-core VMEM capacity; conservative fallback if the query is unavailable."""
    try:
        cap = int(pltpu.get_tpu_info().vmem_capacity_bytes)
        if cap > 0:
            return cap
    except Exception:
        pass
    return 64 << 20  # v7x per-TC VMEM; safe lower bound for v5e/v6e too


def _pick_block(total, target, align):
    """Largest divisor of `total` that is <= target and (aligned or == total)."""
    if total <= target:
        return total
    for d in range(min(target, total), 0, -1):
        if total % d == 0 and (d % align == 0 or d == total):
            return d
    return total


def _next_block(total, cur, align, cap):
    """Smallest valid divisor of `total` that is > cur and <= cap (else cur)."""
    for d in range(cur + 1, min(cap, total) + 1):
        if total % d == 0 and (d % align == 0 or d == total):
            return d
    return cur


def _prev_block(total, cur, align):
    """Largest valid divisor of `total` that is < cur (else cur)."""
    for d in range(cur - 1, 0, -1):
        if total % d == 0 and (d % align == 0 or d == total):
            return d
    return cur


# --------------------------------------------------------------------------
# Wrapper
# --------------------------------------------------------------------------
def fusion_classifier(text_hidden, image_hidden_nchw, weight, bias,
                      *, tb_target=None, ts_target=None, thw_target=None):
    """text_hidden: [B, S, Ht] (f32 or bf16)
       image_hidden_nchw: [B, C, H, W] (f32 or bf16, PyTorch NCHW convention)
       weight: [num_classes, Ht + C] (PyTorch nn.Linear layout)
       bias: [num_classes]
       returns logits: [B, num_classes] f32

       tb/ts/thw targets of None => tiles auto-sized from the VMEM budget.
    """
    B, S, Ht = text_hidden.shape
    _, C, H, W = image_hidden_nchw.shape
    HW = H * W
    K = bias.shape[0]

    # Zero-copy reshape: channels stay in place, H*W lands on the lane dim of
    # each image block; no XLA-side transpose / extra HBM round-trip.
    img = image_hidden_nchw.reshape(B, C, HW)

    # Split + transpose the linear weight so cat+matmul == two matmuls, and
    # fold the mean scales (1/S, 1/HW) into the small weight slices.
    w_t = (jnp.transpose(weight[:, :Ht]) * (1.0 / S)).astype(jnp.float32)   # [Ht, K]
    w_i = (jnp.transpose(weight[:, Ht:]) * (1.0 / HW)).astype(jnp.float32)  # [C, K]
    b2d = bias.reshape(1, K).astype(jnp.float32)

    elem_t = jnp.dtype(text_hidden.dtype).itemsize
    elem_i = jnp.dtype(img.dtype).itemsize

    # Generation-aware VMEM budget.
    cap_bytes = _vmem_capacity_bytes()
    budget = int(0.65 * cap_bytes)

    # Initial tile picks ((8, 128) constraint applies to each block's last two
    # dims; TB alignment comes from the [TB, K] output block).
    tb_cap = B if B < 16 else max(8, B // 2)  # keep n_b >= 2 for v7x megacore
    TB = _pick_block(B, min(tb_target if tb_target is not None else 8, tb_cap), 8)
    TS = _pick_block(S, ts_target if ts_target is not None else 512, 8)
    THW = _pick_block(HW, thw_target if thw_target is not None else 512, 128)
    # TODO(synk): when HW < 128 (e.g. 7x7 CNN feature maps), re-block the image
    # on C instead of a <128-wide lane dim for denser vregs / longer DMA rows.

    def _usage(tb, ts, thw):
        sub_ = 8 if ts % 8 == 0 else ts
        lane_ = 128 if thw % 128 == 0 else thw
        stream = 2 * (elem_t * tb * ts * Ht + elem_i * tb * C * thw)  # dbl-buffered inputs
        resident = 2 * 4 * (Ht * K + C * K + K + tb * K)              # tiny weights/bias/out
        scratch = 4 * (tb * sub_ * Ht + tb * C * lane_)               # single-buffered accumulators
        return stream + resident + scratch

    # Shrink if the initial picks blow the budget (very large Ht / C).
    while _usage(TB, TS, THW) > budget:
        if elem_t * TS * Ht >= elem_i * C * THW and TS > 8:
            n = _prev_block(S, TS, 8)
            if n != TS:
                TS = n
                continue
        if THW > 128:
            n = _prev_block(HW, THW, 128)
            if n != THW:
                THW = n
                continue
        if TB > 1:
            n = _prev_block(B, TB, 8)
            if n != TB:
                TB = n
                continue
        break

    # Grow auto-sized tiles to fill the budget: bigger streamed tiles get
    # closer to the HBM roofline, bigger TB amortizes per-step/epilogue cost.
    grew = True
    while grew:
        grew = False
        if thw_target is None:
            n = _next_block(HW, THW, 128, HW)
            if n != THW and _usage(TB, TS, n) <= budget:
                THW, grew = n, True
        if ts_target is None:
            n = _next_block(S, TS, 8, S)
            if n != TS and _usage(TB, n, THW) <= budget:
                TS, grew = n, True
        if tb_target is None:
            n = _next_block(B, TB, 8, tb_cap)
            if n != TB and _usage(n, TS, THW) <= budget:
                TB, grew = n, True

    sub = 8 if TS % 8 == 0 else TS          # sublane-partial width (text)
    lane = 128 if THW % 128 == 0 else THW   # lane-partial width (image)

    n_b = B // TB
    n_text = S // TS
    n_img = HW // THW
    n_steps = max(n_text, n_img)

    kernel = functools.partial(
        fusion_kernel,
        n_steps=n_steps, n_text_steps=n_text, n_img_steps=n_img,
        sub=sub, lane=lane)

    usage = _usage(TB, TS, THW)
    vmem_limit = int(min(int(0.75 * cap_bytes), max(32 << 20, usage + (8 << 20))))

    cost = pl.CostEstimate(
        flops=int(B * S * Ht + B * C * HW + 2 * B * (Ht + C) * K + B * K),
        bytes_accessed=int(elem_t * B * S * Ht + elem_i * B * C * HW
                           + 4 * (Ht * K + C * K + K + B * K)),
        transcendentals=0,
    )

    grid_spec = pltpu.PrefetchScalarGridSpec(
        num_scalar_prefetch=0,
        grid=(n_b, n_steps),
        in_specs=[
            # text hidden [B, S, Ht]: chunk S; clamp once its chunks run out
            # (pl.when gates the accumulate, so the resident block is not
            # re-counted and not re-DMA'd).
            pl.BlockSpec((TB, TS, Ht),
                         lambda b, k, _n=n_text - 1: (b, jnp.minimum(k, _n), 0)),
            # image hidden [B, C, HW]: chunk HW (lane dim); clamp likewise.
            pl.BlockSpec((TB, C, THW),
                         lambda b, k, _n=n_img - 1: (b, 0, jnp.minimum(k, _n))),
            pl.BlockSpec((Ht, K), lambda b, k: (0, 0)),   # W_text (mean-scaled)
            pl.BlockSpec((C, K), lambda b, k: (0, 0)),    # W_img  (mean-scaled)
            pl.BlockSpec((1, K), lambda b, k: (0, 0)),    # bias
        ],
        # Output resident across the reduction axis; written only in the epilogue.
        out_specs=pl.BlockSpec((TB, K), lambda b, k: (b, 0)),
        scratch_shapes=[
            pltpu.VMEM((TB, sub, Ht), jnp.float32),   # sublane-wide pooled text partial
            pltpu.VMEM((TB, C, lane), jnp.float32),   # lane-wide pooled image partial
        ],
    )

    return pl.pallas_call(
        kernel,
        out_shape=jax.ShapeDtypeStruct((B, K), jnp.float32),
        grid_spec=grid_spec,
        compiler_params=pltpu.CompilerParams(
            dimension_semantics=("parallel", "arbitrary"),
            vmem_limit_bytes=vmem_limit,
        ),
        cost_estimate=cost,
    )(text_hidden, img, w_t, w_i, b2d)


# --------------------------------------------------------------------------
# Pure-JAX reference
# --------------------------------------------------------------------------
def reference(text_hidden, image_hidden_nchw, weight, bias):
    text_feat = jnp.mean(text_hidden, axis=1)
    img_feat = jnp.mean(image_hidden_nchw, axis=(2, 3))
    fused = jnp.concatenate([text_feat, img_feat], axis=1)
    return fused @ weight.T + bias


if __name__ == "__main__":
    # Small shapes consistent with the forward pass.
    B, S, Ht = 2, 8, 32          # text: batch, seq, text hidden size
    C, H, W = 4, 16, 16          # image: channels (image hidden size), spatial
    K = 5                        # num_classes
    fusion_dim = Ht + C

    key = jax.random.PRNGKey(0)
    k_text, k_img, k_w, k_b = jax.random.split(key, 4)

    text_hidden = jax.random.normal(k_text, (B, S, Ht), dtype=jnp.float32)
    image_hidden = jax.random.normal(k_img, (B, C, H, W), dtype=jnp.float32)
    # nn.Linear(fusion_dim, num_classes) parameter shapes.
    weight = jax.random.normal(k_w, (K, fusion_dim), dtype=jnp.float32) * 0.05
    bias = jax.random.normal(k_b, (K,), dtype=jnp.float32) * 0.05

    ref = reference(text_hidden, image_hidden, weight, bias)

    # 1) Auto-sized tiles (VMEM-budget driven): single reduction step here.
    logits = jax.block_until_ready(
        fusion_classifier(text_hidden, image_hidden, weight, bias))
    assert logits.shape == (B, K)
    assert jnp.allclose(logits, ref, atol=1e-4, rtol=1e-4), (
        f"auto max err {jnp.max(jnp.abs(logits - ref))}")

    # 2) Forced multi-step reduction (THW=128 -> 2 image chunks, text gated):
    #    exercises the clamped index_maps + pl.when-gated accumulation path.
    logits2 = jax.block_until_ready(
        fusion_classifier(text_hidden, image_hidden, weight, bias,
                          thw_target=128))
    assert jnp.allclose(logits2, ref, atol=1e-4, rtol=1e-4), (
        f"gated max err {jnp.max(jnp.abs(logits2 - ref))}")

    # 3) bf16 streamed hidden states (native-dtype streaming, f32 accumulate).
    text_bf = text_hidden.astype(jnp.bfloat16)
    img_bf = image_hidden.astype(jnp.bfloat16)
    logits3 = jax.block_until_ready(
        fusion_classifier(text_bf, img_bf, weight, bias))
    ref_bf = reference(text_bf.astype(jnp.float32), img_bf.astype(jnp.float32),
                       weight, bias)
    assert jnp.allclose(logits3, ref_bf, atol=2e-3, rtol=2e-3), (
        f"bf16 max err {jnp.max(jnp.abs(logits3 - ref_bf))}")

    print("KERNEL_OK")
</pallas_src>

<mosaic_0001>
module attributes {stable_mosaic.version = 11 : i64} {
  func.func @fusion_kernel(%arg0: i32, %arg1: i32, %arg2: memref<2x8x32xf32, #tpu.memory_space<vmem>>, %arg3: memref<2x4x256xf32, #tpu.memory_space<vmem>>, %arg4: memref<32x5xf32, #tpu.memory_space<vmem>>, %arg5: memref<4x5xf32, #tpu.memory_space<vmem>>, %arg6: memref<1x5xf32, #tpu.memory_space<vmem>>, %arg7: memref<2x5xf32, #tpu.memory_space<vmem>>, %arg8: memref<2x8x32xf32, #tpu.memory_space<vmem>>, %arg9: memref<2x4x128xf32, #tpu.memory_space<vmem>>) attributes {dimension_semantics = [#tpu.dimension_semantics<parallel>, #tpu.dimension_semantics<arbitrary>], iteration_bounds = array<i64: 1, 1>, scalar_prefetch = 0 : i64, scratch_operands = 2 : i64, tpu.core_type = #tpu.core_type<tc>, window_params = [{transform_indices = @transform_0, window_bounds = array<i64: 2, 8, 32>}, {transform_indices = @transform_1, window_bounds = array<i64: 2, 4, 256>}, {pipeline_mode = #tpu.pipeline_mode<synchronous>, transform_indices = @transform_2, window_bounds = array<i64: 32, 5>}, {pipeline_mode = #tpu.pipeline_mode<synchronous>, transform_indices = @transform_3, window_bounds = array<i64: 4, 5>}, {pipeline_mode = #tpu.pipeline_mode<synchronous>, transform_indices = @transform_4, window_bounds = array<i64: 1, 5>}, {transform_indices = @transform_5, window_bounds = array<i64: 2, 5>}]} {
    %c0_i32 = arith.constant 0 : i32
    %0 = arith.cmpi eq, %arg1, %c0_i32 : i32
    %1 = arith.extui %0 : i1 to i32
    %c0_i32_0 = arith.constant 0 : i32
    %2 = arith.cmpi ne, %1, %c0_i32_0 : i32
    scf.if %2 {
      %cst = arith.constant 0.000000e+00 : f32
      %17 = vector.broadcast %cst : f32 to vector<2x8x32xf32>
      %c0_20 = arith.constant 0 : index
      %c0_21 = arith.constant 0 : index
      %c0_22 = arith.constant 0 : index
      %18 = vector.load %arg8[%c0_20, %c0_21, %c0_22] : memref<2x8x32xf32, #tpu.memory_space<vmem>>, vector<2x8x32xf32>
      tpu.vector_store %arg8[%c0_20, %c0_21, %c0_22], %17 {strides = array<i32>} : memref<2x8x32xf32, #tpu.memory_space<vmem>>, vector<2x8x32xf32>,
      %cst_23 = arith.constant 0.000000e+00 : f32
      %19 = vector.broadcast %cst_23 : f32 to vector<2x4x128xf32>
      %c0_24 = arith.constant 0 : index
      %c0_25 = arith.constant 0 : index
      %c0_26 = arith.constant 0 : index
      %20 = vector.load %arg9[%c0_24, %c0_25, %c0_26] : memref<2x4x128xf32, #tpu.memory_space<vmem>>, vector<2x4x128xf32>
      tpu.vector_store %arg9[%c0_24, %c0_25, %c0_26], %19 {strides = array<i32>} : memref<2x4x128xf32, #tpu.memory_space<vmem>>, vector<2x4x128xf32>,
    } else {
    }
    %c0 = arith.constant 0 : index
    %c0_1 = arith.constant 0 : index
    %c0_2 = arith.constant 0 : index
    %3 = vector.load %arg2[%c0, %c0_1, %c0_2] : memref<2x8x32xf32, #tpu.memory_space<vmem>>, vector<2x8x32xf32>
    %c0_3 = arith.constant 0 : index
    %c0_4 = arith.constant 0 : index
    %c0_5 = arith.constant 0 : index
    %4 = vector.load %arg8[%c0_3, %c0_4, %c0_5] : memref<2x8x32xf32, #tpu.memory_space<vmem>>, vector<2x8x32xf32>
    %5 = arith.addf %4, %3 : vector<2x8x32xf32>
    %c0_6 = arith.constant 0 : index
    %c0_7 = arith.constant 0 : index
    %c0_8 = arith.constant 0 : index
    %6 = vector.load %arg8[%c0_6, %c0_7, %c0_8] : memref<2x8x32xf32, #tpu.memory_space<vmem>>, vector<2x8x32xf32>
    tpu.vector_store %arg8[%c0_6, %c0_7, %c0_8], %5 {strides = array<i32>} : memref<2x8x32xf32, #tpu.memory_space<vmem>>, vector<2x8x32xf32>,
    %c0_9 = arith.constant 0 : index
    %c0_10 = arith.constant 0 : index
    %c0_11 = arith.constant 0 : index
    %7 = vector.load %arg3[%c0_9, %c0_10, %c0_11] : memref<2x4x256xf32, #tpu.memory_space<vmem>>, vector<2x4x256xf32>
    %8 = vector.extract_strided_slice %7 {offsets = [0, 0, 0], sizes = [2, 4, 128], strides = [1, 1, 1]} : vector<2x4x256xf32> to vector<2x4x128xf32>
    %9 = vector.extract_strided_slice %7 {offsets = [0, 0, 128], sizes = [2, 4, 128], strides = [1, 1, 1]} : vector<2x4x256xf32> to vector<2x4x128xf32>
    %10 = arith.addf %8, %9 : vector<2x4x128xf32>
    %c0_12 = arith.constant 0 : index
    %c0_13 = arith.constant 0 : index
    %c0_14 = arith.constant 0 : index
    %11 = vector.load %arg9[%c0_12, %c0_13, %c0_14] : memref<2x4x128xf32, #tpu.memory_space<vmem>>, vector<2x4x128xf32>
    %12 = arith.addf %11, %10 : vector<2x4x128xf32>
    %c0_15 = arith.constant 0 : index
    %c0_16 = arith.constant 0 : index
    %c0_17 = arith.constant 0 : index
    %13 = vector.load %arg9[%c0_15, %c0_16, %c0_17] : memref<2x4x128xf32, #tpu.memory_space<vmem>>, vector<2x4x128xf32>
    tpu.vector_store %arg9[%c0_15, %c0_16, %c0_17], %12 {strides = array<i32>} : memref<2x4x128xf32, #tpu.memory_space<vmem>>, vector<2x4x128xf32>,
    %c0_i32_18 = arith.constant 0 : i32
    %14 = arith.cmpi eq, %arg1, %c0_i32_18 : i32
    %15 = arith.extui %14 : i1 to i32
    %c0_i32_19 = arith.constant 0 : i32
    %16 = arith.cmpi ne, %15, %c0_i32_19 : i32
    scf.if %16 {
      %c0_20 = arith.constant 0 : index
      %c0_21 = arith.constant 0 : index
      %c0_22 = arith.constant 0 : index
      %17 = vector.load %arg8[%c0_20, %c0_21, %c0_22] : memref<2x8x32xf32, #tpu.memory_space<vmem>>, vector<2x8x32xf32>
      %cst = arith.constant dense<0.000000e+00> : vector<2x32xf32>
      %18 = vector.multi_reduction <add>, %17, %cst [1] : vector<2x8x32xf32> to vector<2x32xf32>
      %c0_23 = arith.constant 0 : index
      %c0_24 = arith.constant 0 : index
      %c0_25 = arith.constant 0 : index
      %19 = vector.load %arg9[%c0_23, %c0_24, %c0_25] : memref<2x4x128xf32, #tpu.memory_space<vmem>>, vector<2x4x128xf32>
      %cst_26 = arith.constant dense<0.000000e+00> : vector<2x4xf32>
      %20 = vector.multi_reduction <add>, %19, %cst_26 [2] : vector<2x4x128xf32> to vector<2x4xf32>
      %c0_27 = arith.constant 0 : index
      %c0_28 = arith.constant 0 : index
      %21 = vector.load %arg4[%c0_27, %c0_28] : memref<32x5xf32, #tpu.memory_space<vmem>>, vector<32x5xf32>
      %cst_29 = arith.constant dense<0.000000e+00> : vector<2x5xf32>
      %22 = tpu.matmul %18, %21, %cst_29 {dimension_numbers = #tpu.dot_dimension_numbers<[1], [0], [0], [1], [0, 0, 1, 1], [], []>} : vector<2x32xf32>, vector<32x5xf32>, vector<2x5xf32> -> vector<2x5xf32>
      %c0_30 = arith.constant 0 : index
      %c0_31 = arith.constant 0 : index
      %23 = vector.load %arg5[%c0_30, %c0_31] : memref<4x5xf32, #tpu.memory_space<vmem>>, vector<4x5xf32>
      %cst_32 = arith.constant dense<0.000000e+00> : vector<2x5xf32>
      %24 = tpu.matmul %20, %23, %cst_32 {dimension_numbers = #tpu.dot_dimension_numbers<[1], [0], [0], [1], [0, 0, 1, 1], [], []>} : vector<2x4xf32>, vector<4x5xf32>, vector<2x5xf32> -> vector<2x5xf32>
      %25 = arith.addf %22, %24 : vector<2x5xf32>
      %c0_33 = arith.constant 0 : index
      %c0_34 = arith.constant 0 : index
      %26 = vector.load %arg6[%c0_33, %c0_34] : memref<1x5xf32, #tpu.memory_space<vmem>>, vector<1x5xf32>
      %27 = vector.broadcast %26 : vector<1x5xf32> to vector<2x5xf32>
      %28 = arith.addf %25, %27 : vector<2x5xf32>
      %c0_35 = arith.constant 0 : index
      %c0_36 = arith.constant 0 : index
      %29 = vector.load %arg7[%c0_35, %c0_36] : memref<2x5xf32, #tpu.memory_space<vmem>>, vector<2x5xf32>
      tpu.vector_store %arg7[%c0_35, %c0_36], %28 {strides = array<i32>} : memref<2x5xf32, #tpu.memory_space<vmem>>, vector<2x5xf32>,
    } else {
    }
    return
  }
  func.func @transform_0(%arg0: i32, %arg1: i32) -> (i32, i32, i32) {
    %c0_i32 = arith.constant 0 : i32
    %0 = arith.minsi %arg1, %c0_i32 : i32
    %c0_i32_0 = arith.constant 0 : i32
    %c0_i32_1 = arith.constant 0 : i32
    return %arg0, %0, %c0_i32_0 : i32, i32, i32
  }
  func.func @transform_1(%arg0: i32, %arg1: i32) -> (i32, i32, i32) {
    %c0_i32 = arith.constant 0 : i32
    %0 = arith.minsi %arg1, %c0_i32 : i32
    %c0_i32_0 = arith.constant 0 : i32
    %c0_i32_1 = arith.constant 0 : i32
    return %arg0, %c0_i32_0, %0 : i32, i32, i32
  }
  func.func @transform_2(%arg0: i32, %arg1: i32) -> (i32, i32) {
    %c0_i32 = arith.constant 0 : i32
    %c0_i32_0 = arith.constant 0 : i32
    %c0_i32_1 = arith.constant 0 : i32
    return %c0_i32, %c0_i32_0 : i32, i32
  }
  func.func @transform_3(%arg0: i32, %arg1: i32) -> (i32, i32) {
    %c0_i32 = arith.constant 0 : i32
    %c0_i32_0 = arith.constant 0 : i32
    %c0_i32_1 = arith.constant 0 : i32
    return %c0_i32, %c0_i32_0 : i32, i32
  }
  func.func @transform_4(%arg0: i32, %arg1: i32) -> (i32, i32) {
    %c0_i32 = arith.constant 0 : i32
    %c0_i32_0 = arith.constant 0 : i32
    %c0_i32_1 = arith.constant 0 : i32
    return %c0_i32, %c0_i32_0 : i32, i32
  }
  func.func @transform_5(%arg0: i32, %arg1: i32) -> (i32, i32) {
    %c0_i32 = arith.constant 0 : i32
    %c0_i32_0 = arith.constant 0 : i32
    return %arg0, %c0_i32 : i32, i32
  }
}

</mosaic_0001>

<llo_original>
// kernel: tpu_custom_call.1
$region0: #{tpu_custom_call.1}
  #allocation0 [shape = 'u32[]', space=smem, size = 0x4, offset = 0x4, fixed_abs, tag = 'smem constant byte address 0x4 - core index']
  #allocation1 [shape = 'u32[144,128]{1,0:T(1,128)}', space=vmem, size = 0x12000, scoped, tag = 'internal scratch']
  #allocation2 [shape = 'f32[2,8,32]{2,1,0:T(8,128)}', space=vmem, size = 0x2000, scoped, tag = 'scratch operand']
  #allocation3 [shape = 'f32[2,4,128]{2,1,0:T(4,128)}', space=vmem, size = 0x1000, scoped, tag = 'scratch operand']
  %s0 = inlined_call_operand.vmem [shape: f32[2,8,32], index: 0, kind: input, shape index: {}]
  %s1 = inlined_call_operand.vmem [shape: f32[2,4,256], index: 1, kind: input, shape index: {}]
  %s2 = inlined_call_operand.vmem [shape: f32[32,5], index: 2, kind: input, shape index: {}]
  %s3 = inlined_call_operand.vmem [shape: f32[4,5], index: 3, kind: input, shape index: {}]
  %s4 = inlined_call_operand.vmem [shape: f32[1,5], index: 4, kind: input, shape index: {}]
  %s5 = inlined_call_operand.hbm [shape: f32[2,5], index: 5, kind: output, shape index: {}]
  %s6 = sld [smem:[#allocation0]]
  $region38: #{tpu_custom_call.1} parent=0
    _
  %s8 = ssub.s32 1, %s6
  %s9 = scalar_select 0, %s8, %s6
  $region1: #{tpu_custom_call.1} parent=0
    #allocation4 [shape = 'u8[1024]{0}', space=vmem, size = 0x400, scoped, tag = 'output window, operand 0, single buffered']
    #allocation5 [shape = 's32[1]{0}', space=sflag, size = 0x4, scoped, tag = 'scoped memory for tpu_custom_call.1']
    %10 = vsyncpa [#allocation5], 0
    // Predicated region
    $region2: #{tpu_custom_call.1} parent=1 // pred_check
      _
    $region3: #{tpu_custom_call.1} parent=1 // pred_check_branch
      %12 = sbr.rel (0) target = $region5
    $region4: #{tpu_custom_call.1} parent=1 // pred_region
      _
    $region5: #{tpu_custom_call.1} parent=1 // pred_fallthru
      _
    // Predicated region
    $region6: #{tpu_custom_call.1} parent=1 // pred_check
      _
    $region7: #{tpu_custom_call.1} parent=1 // pred_check_branch
      %14 = sbr.rel (0) target = $region9
    $region8: #{tpu_custom_call.1} parent=1 // pred_region
      _
    $region9: #{tpu_custom_call.1} parent=1 // pred_fallthru
      _
    // Predicated region
    $region10: #{tpu_custom_call.1} parent=1 // pred_check
      _
    $region11: #{tpu_custom_call.1} parent=1 // pred_check_branch
      %16 = sbr.rel (0) target = $region13
    $region12: #{tpu_custom_call.1} parent=1 // pred_region
      _
    $region13: #{tpu_custom_call.1} parent=1 // pred_fallthru
      _
    // Predicated region
    $region14: #{tpu_custom_call.1} parent=1 // pred_check
      _
    $region15: #{tpu_custom_call.1} parent=1 // pred_check_branch
      %18 = sbr.rel (0) target = $region17
    $region16: #{tpu_custom_call.1} parent=1 // pred_region
      _
    $region17: #{tpu_custom_call.1} parent=1 // pred_fallthru
      _
    // Predicated region
    $region18: #{tpu_custom_call.1} parent=1 // pred_check
      _
    $region19: #{tpu_custom_call.1} parent=1 // pred_check_branch
      %20 = sbr.rel (0) target = $region21
    $region20: #{tpu_custom_call.1} parent=1 // pred_region
      _
    $region21: #{tpu_custom_call.1} parent=1 // pred_fallthru
      _
    %p21 = scmp.eq.s32.totalorder 0, 0
    // Predicated region
    $region22: #{tpu_custom_call.1} parent=1 // pred_check
      %p22 = pneg %p21
    $region23: #{tpu_custom_call.1} parent=1 // pred_check_branch
      %24 = sbr.rel (%p22) target = $region25
    $region24: #{tpu_custom_call.1} parent=1 // pred_region
      %vm25 = vcmask 261120
      %26 = vst.msk [vmem:[#allocation2] sm:$0xff] %vm25, 0.0
      %27 = vst.msk [vmem:[#allocation2 + $0x8] sm:$0xff] %vm25, 0.0
      %28 = vst [vmem:[#allocation3] sm:$0xf] 0.0
      %29 = vst [vmem:[#allocation3 + $0x4] sm:$0xf] 0.0
    $region25: #{tpu_custom_call.1} parent=1 // pred_fallthru
      _
    %v30 = vld [vmem:[%s0] sm:$0xff]
    %v31 = vld [vmem:[%s0 + $0x8] sm:$0xff]
    %v32 = vld [vmem:[#allocation2] sm:$0xff]
    %v33 = vld [vmem:[#allocation2 + $0x8] sm:$0xff]
    %v34 = vadd.f32 %v32, %v30
    %v35 = vadd.f32 %v33, %v31
    %vm36 = vcmask 261120
    %37 = vst.msk [vmem:[#allocation2] sm:$0xff] %vm36, %v34
    %38 = vst.msk [vmem:[#allocation2 + $0x8] sm:$0xff] %vm36, %v35
    %v39 = vld [vmem:[%s1] sm:$0xff]
    %v40 = vld [vmem:[%s1 + $0x8] sm:$0xff]
    %v43 = vrot.slane %v39, 4
    %v44 = vrot.slane %v40, 4
    %v47 = vadd.f32 %v39, %v43
    %v48 = vadd.f32 %v40, %v44
    %v49 = vld [vmem:[#allocation3] sm:$0xf]
    %v50 = vld [vmem:[#allocation3 + $0x4] sm:$0xf]
    %v51 = vadd.f32 %v49, %v47
    %v52 = vadd.f32 %v50, %v48
    %53 = vst [vmem:[#allocation3] sm:$0xf] %v51
    %54 = vst [vmem:[#allocation3 + $0x4] sm:$0xf] %v52
    // Predicated region
    $region26: #{tpu_custom_call.1} parent=1 // pred_check
      %p55 = pneg %p21
    $region27: #{tpu_custom_call.1} parent=1 // pred_check_branch
      %57 = sbr.rel (%p55) target = $region29
    $region28: #{tpu_custom_call.1} parent=1 // pred_region
      %v58 = vld [vmem:[#allocation2] sm:$0xff]
      %v59 = vld [vmem:[#allocation2 + $0x8] sm:$0xff]
      %v60 = vsel %vm36, %v58, 0.0
      %v61 = vrot.slane %v60, 4
      %v62 = vadd.f32 %v60, %v61
      %v63 = vrot.slane %v62, 2
      %v64 = vadd.f32 %v62, %v63
      %v65 = vrot.slane %v64, 1
      %v66 = vadd.f32 %v64, %v65
      %v67 = vsel %vm36, %v59, 0.0
      %v68 = vrot.slane %v67, 4
      %v69 = vadd.f32 %v67, %v68
      %v70 = vrot.slane %v69, 2
      %v71 = vadd.f32 %v69, %v70
      %v72 = vrot.slane %v71, 1
      %v73 = vadd.f32 %v71, %v72
      %v74 = vld [vmem:[#allocation3] sm:$0xf]
      %v75 = vld [vmem:[#allocation3 + $0x4] sm:$0xf]
      %vm76 = vcmask 1043456
      %v77 = vsel %vm76, %v74, 0.0
      %78 = vadd.xlane.f32.xlu0 %v77
      %v79 = vpop.xlane.xlu0 %78
      %v80 = vsel %vm76, %v75, 0.0
      %81 = vadd.xlane.f32.xlu0 %v80
      %v82 = vpop.xlane.xlu0 %81
      %v83 = vld [vmem:[%s2] sm:$0xff]
      %v84 = vld [vmem:[%s2 + $0x8] sm:$0xff]
      %v85 = vld [vmem:[%s2 + $0x10] sm:$0xff]
      %v86 = vld [vmem:[%s2 + $0x18] sm:$0xff]
      %v87 = vld [vmem:[%s3] sm:$0xf]
      %v90 = vlaneseq
      %v91 = vand.u32 %v90, 127
      %v92 = vlaneseq
      %v93 = vshrl.u32 %v92, 7
      %v94 = vsub.s32 %v91, %v93
      %v95 = vrot.slane %v79, %v94
      %v96 = vlaneseq
      %v97 = vshrl.u32 %v96, 7
      %v98 = vsub.s32 %v91, %v97
      %v99 = vrot.slane %v82, %v98
      %vm100 = vcmask 1041409
      %v101 = vsel %vm100, %v99, %v95
      %vm102 = vcmask 31744
      %v103 = vsel %vm102, %v101, 0
      %v106 = vsel %vm76, %v87, 0
      %108 = vmatprep.subr.mxu0 0.0
      %109 = vmatpush1.msra.mxu0 0.0
      %110 = vmatprep.subr.mxu0 0.0
      %111 = vmatpush1.msra.mxu0 0.0
      %112 = vmatprep.subr.mxu0 0.0
      %113 = vmatpush1.msra.mxu0 0.0
      %114 = vmatprep.subr.mxu0 0.0
      %115 = vmatpush1.msra.mxu0 0.0
      %116 = vmatprep.subr.mxu0 0.0
      %117 = vmatpush1.msra.mxu0 0.0
      %118 = vmatprep.subr.mxu0 0.0
      %119 = vmatpush1.msra.mxu0 0.0
      %120 = vmatprep.subr.mxu0 0.0
      %121 = vmatpush1.msra.mxu0 0.0
      %122 = vmatprep.subr.mxu0 0.0
      %123 = vmatpush1.msra.mxu0 0.0
      %124 = vmatprep.subr.mxu0 0.0
      %125 = vmatpush1.msra.mxu0 0.0
      %126 = vmatprep.subr.mxu0 0.0
      %127 = vmatpush1.msra.mxu0 0.0
      %128 = vmatprep.subr.mxu0 0.0
      %129 = vmatpush1.msra.mxu0 0.0
      %130 = vmatprep.subr.mxu0 0.0
      %131 = vmatpush1.msra.mxu0 0.0
      %132 = vmatprep.subr.mxu0 0.0
      %133 = vmatpush1.msra.mxu0 0.0
      %134 = vmatprep.subr.mxu0 0.0
      %135 = vmatpush1.msra.mxu0 0.0
      %136 = vmatprep.subr.mxu0 0.0
      %137 = vmatpush1.msra.mxu0 0.0
      %138 = vmatprep.subr.mxu0 0.0
      %139 = vmatpush1.msra.mxu0 %v106
      %140 = vmatprep.subr.mxu0 0.0
      %141 = vmatpush2.msra.mxu0 0.0
      %142 = vmatprep.subr.mxu0 0.0
      %143 = vmatpush2.msra.mxu0 0.0
      %144 = vmatprep.subr.mxu0 0.0
      %145 = vmatpush2.msra.mxu0 0.0
      %146 = vmatprep.subr.mxu0 0.0
      %147 = vmatpush2.msra.mxu0 0.0
      %148 = vmatprep.subr.mxu0 0.0
      %149 = vmatpush2.msra.mxu0 0.0
      %150 = vmatprep.subr.mxu0 0.0
      %151 = vmatpush2.msra.mxu0 0.0
      %152 = vmatprep.subr.mxu0 0.0
      %153 = vmatpush2.msra.mxu0 0.0
      %154 = vmatprep.subr.mxu0 0.0
      %155 = vmatpush2.msra.mxu0 0.0
      %156 = vmatprep.subr.mxu0 0.0
      %157 = vmatpush2.msra.mxu0 0.0
      %158 = vmatprep.subr.mxu0 0.0
      %159 = vmatpush2.msra.mxu0 0.0
      %160 = vmatprep.subr.mxu0 0.0
      %161 = vmatpush2.msra.mxu0 0.0
      %162 = vmatprep.subr.mxu0 0.0
      %163 = vmatpush2.msra.mxu0 0.0
      %164 = vmatprep.subr.mxu0 0.0
      %165 = vmatpush2.msra.mxu0 0.0
      %166 = vmatprep.subr.mxu0 0.0
      %167 = vmatpush2.msra.mxu0 0.0
      %168 = vmatprep.subr.mxu0 0.0
      %169 = vmatpush2.msra.mxu0 0.0
      %170 = vmatprep.subr.mxu0 0.0
      %171 = vmatpush2.msra.mxu0 0.0
      %172 = vmatprep.mubr.f32.mxu0 0.0
      %173 = vmatmul.mubr.f32.gmra.mxu0 %v103
      %v174 = vpop.f32.mrf.mxu0
      %v175 = vadd.f32 0.0, %v174
      %v176 = vpop.f32.mrf.mxu0
      %177 = vdwg.mxu0
      %v180 = vsel %vm100, %v73, %v66
      %v181 = vsel %vm36, %v180, 0
      %183 = vmatprep.subr.mxu0 0.0
      %184 = vmatpush1.msra.mxu0 0.0
      %185 = vmatprep.subr.mxu0 0.0
      %186 = vmatpush1.msra.mxu0 0.0
      %187 = vmatprep.subr.mxu0 0.0
      %188 = vmatpush1.msra.mxu0 0.0
      %189 = vmatprep.subr.mxu0 0.0
      %190 = vmatpush1.msra.mxu0 0.0
      %191 = vmatprep.subr.mxu0 0.0
      %192 = vmatpush1.msra.mxu0 0.0
      %193 = vmatprep.subr.mxu0 0.0
      %194 = vmatpush1.msra.mxu0 0.0
      %195 = vmatprep.subr.mxu0 0.0
      %196 = vmatpush1.msra.mxu0 0.0
      %197 = vmatprep.subr.mxu0 0.0
      %198 = vmatpush1.msra.mxu0 0.0
      %199 = vmatprep.subr.mxu0 0.0
      %200 = vmatpush1.msra.mxu0 0.0
      %201 = vmatprep.subr.mxu0 0.0
      %202 = vmatpush1.msra.mxu0 0.0
      %203 = vmatprep.subr.mxu0 0.0
      %204 = vmatpush1.msra.mxu0 0.0
      %205 = vmatprep.subr.mxu0 0.0
      %206 = vmatpush1.msra.mxu0 0.0
      %207 = vmatprep.subr.mxu0 0.0
      %208 = vmatpush1.msra.mxu0 %v86
      %209 = vmatprep.subr.mxu0 0.0
      %210 = vmatpush1.msra.mxu0 %v85
      %211 = vmatprep.subr.mxu0 0.0
      %212 = vmatpush1.msra.mxu0 %v84
      %213 = vmatprep.subr.mxu0 0.0
      %214 = vmatpush1.msra.mxu0 %v83
      %215 = vmatprep.subr.mxu0 0.0
      %216 = vmatpush2.msra.mxu0 0.0
      %217 = vmatprep.subr.mxu0 0.0
      %218 = vmatpush2.msra.mxu0 0.0
      %219 = vmatprep.subr.mxu0 0.0
      %220 = vmatpush2.msra.mxu0 0.0
      %221 = vmatprep.subr.mxu0 0.0
      %222 = vmatpush2.msra.mxu0 0.0
      %223 = vmatprep.subr.mxu0 0.0
      %224 = vmatpush2.msra.mxu0 0.0
      %225 = vmatprep.subr.mxu0 0.0
      %226 = vmatpush2.msra.mxu0 0.0
      %227 = vmatprep.subr.mxu0 0.0
      %228 = vmatpush2.msra.mxu0 0.0
      %229 = vmatprep.subr.mxu0 0.0
      %230 = vmatpush2.msra.mxu0 0.0
      %231 = vmatprep.subr.mxu0 0.0
      %232 = vmatpush2.msra.mxu0 0.0
      %233 = vmatprep.subr.mxu0 0.0
      %234 = vmatpush2.msra.mxu0 0.0
      %235 = vmatprep.subr.mxu0 0.0
      %236 = vmatpush2.msra.mxu0 0.0
      %237 = vmatprep.subr.mxu0 0.0
      %238 = vmatpush2.msra.mxu0 0.0
      %239 = vmatprep.subr.mxu0 0.0
      %240 = vmatpush2.msra.mxu0 0.0
      %241 = vmatprep.subr.mxu0 0.0
      %242 = vmatpush2.msra.mxu0 0.0
      %243 = vmatprep.subr.mxu0 0.0
      %244 = vmatpush2.msra.mxu0 0.0
      %245 = vmatprep.subr.mxu0 0.0
      %246 = vmatpush2.msra.mxu0 0.0
      %247 = vmatprep.mubr.f32.mxu0 0.0
      %248 = vmatmul.mubr.f32.gmra.mxu0 %v181
      %v249 = vpop.f32.mrf.mxu0
      %v250 = vadd.f32 %v175, %v249
      %v251 = vpop.f32.mrf.mxu0
      %252 = vdwg.mxu0
      %v253 = vld [vmem:[%s4] sm:$0x1]
      %v255 = vlaneseq
      %v256 = vshrl.u32 %v255, 7
      %v257 = vsub.s32 0, %v256
      %v258 = vrot.slane %v253, %v257
      %v260 = vadd.f32 %v250, %v258
      %vm261 = vcmask 33792
      %262 = vst.msk [vmem:[#allocation4] sm:$0x3] %vm261, %v260
    $region29: #{tpu_custom_call.1} parent=1 // pred_fallthru
      _
    // Predicated region
    $region30: #{tpu_custom_call.1} parent=1 // pred_check
      _
    $region31: #{tpu_custom_call.1} parent=1 // pred_check_branch
      %264 = sbr.rel (0) target = $region33
    $region32: #{tpu_custom_call.1} parent=1 // pred_region
      %s266 = ssub.s32 32, 32
      %267 = vsyncadd [#allocation5], %s266
      %s269 = sshll.u32 [#allocation4], 4
      %s270 = int_to_ptr.vmem [resolvable:$true] %s269
      %272 = dma.vmem_to_hbm [thread:$0]  %s270, 32, %s5, [#allocation5]
    $region33: #{tpu_custom_call.1} parent=1 // pred_fallthru
      _
    // Predicated region
    $region34: #{tpu_custom_call.1} parent=1 // pred_check
      _
    $region35: #{tpu_custom_call.1} parent=1 // pred_check_branch
      %274 = sbr.rel (0) target = $region37
    $region36: #{tpu_custom_call.1} parent=1 // pred_region
      %275 = dma.done [#allocation5], 32
    $region37: #{tpu_custom_call.1} parent=1 // pred_fallthru
      _
    %276 = vsyncpa [#allocation5], 1

</llo_original>
